<compile_context>
chip_gen: v7x
topology: tpu7x:2x2x1
jax: 0.10.0
libtpu: 0.0.40
codegen_flags: <defaults>
</compile_context>

<pallas_src>
import functools

import jax
import jax.numpy as jnp
from jax.experimental import pallas as pl
from jax.experimental.pallas import tpu as pltpu


# ----------------------------- Pallas kernel ------------------------------ #
def _gemm_bn_relu_kernel(x_ref, w_ref, b_ref, o_ref):
    # x_ref: (1, K_pad, tm)  bf16 im2col-T tile (K on sublanes, output pixels on lanes)
    # w_ref: (O_pad, K_pad)  bf16 BN-folded weights (resident across the grid)
    # b_ref: (O_pad, 1)      f32 folded BN bias (resident)
    # o_ref: (1, O_pad, tm)  f32 output tile (lane-dense -> unmasked stores)
    y = jax.lax.dot_general(
        w_ref[...], x_ref[0],
        dimension_numbers=(((1,), (0,)), ((), ())),       # contract K -> (O_pad, tm)
        preferred_element_type=jnp.float32)               # single MXU pass over the whole K
    o_ref[0] = jnp.maximum(y + b_ref[...], 0.0).astype(o_ref.dtype)


def _round_up(x, m):
    return ((x + m - 1) // m) * m


def _pick_tm(m_pad, k_pad, vmem_budget_bytes=4 << 20, cap=2048):
    """Largest lane-dense tile (multiple of 128) dividing m_pad, within a VMEM budget."""
    bytes_per_col = 2 * 2 * k_pad                 # bf16, double-buffered input block
    cap = min(cap, max(128, (vmem_budget_bytes // bytes_per_col) // 128 * 128))
    best, t = 128, 128
    while t <= min(m_pad, cap):
        if m_pad % t == 0:
            best = t
        t += 128
    return best


# ------------------------------- wrapper ----------------------------------- #
@functools.partial(jax.jit, static_argnames=("stride", "padding", "eps"))
def basic_conv2d(x, weight, gamma, beta, running_mean, running_var,
                 *, stride=1, padding=0, eps=1e-3):
    """BasicConv2d forward. x: (N, C, H, W) NCHW; weight: (O, C, kh, kw). Returns NCHW f32."""
    N, C, H, W = x.shape
    O, _, kh, kw = weight.shape
    Hp, Wp = H + 2 * padding, W + 2 * padding
    OH = (Hp - kh) // stride + 1
    OW = (Wp - kw) // stride + 1

    # Fold inference-mode BatchNorm into the conv weights + a bias vector (one-time).
    scale = gamma / jnp.sqrt(running_var + eps)                  # (O,)
    bias = beta - running_mean * scale                           # (O,)
    w_fold = weight * scale[:, None, None, None]                 # (O, C, kh, kw)

    K = kh * kw * C
    K_pad = _round_up(K, 16)       # bf16 sublane packing of the contraction axis
    O_pad = _round_up(O, 16)       # 16 for bf16 weight sublanes; >=8 suffices for f32 output
    M = OH * OW
    M_pad = _round_up(M, 128)      # lane-dense cols / output

    # Weights as (O_pad, K_pad) bf16; K ordered (i, j, c) to match the im2col gather below.
    w2d = jnp.transpose(w_fold, (0, 2, 3, 1)).reshape(O, K)
    w2d = jnp.pad(w2d, ((0, O_pad - O), (0, K_pad - K))).astype(jnp.bfloat16)
    bias_p = jnp.pad(bias, (0, O_pad - O)).reshape(O_pad, 1).astype(jnp.float32)

    # im2col (transposed): cols[n, (i*kw+j)*C + c, oh*OW + ow] = x_pad[n, c, oh*s+i, ow*s+j].
    x_pad = jnp.pad(x, ((0, 0), (0, 0), (padding, padding), (padding, padding)))
    x_pad = x_pad.astype(jnp.bfloat16)
    taps = [x_pad[:, :, i:i + (OH - 1) * stride + 1:stride,
                  j:j + (OW - 1) * stride + 1:stride]
            for i in range(kh) for j in range(kw)]               # each (N, C, OH, OW)
    cols = jnp.stack(taps, axis=1).reshape(N, K, M)              # (N, kh*kw*C, OH*OW)
    cols = jnp.pad(cols, ((0, 0), (0, K_pad - K), (0, M_pad - M)))

    tm = _pick_tm(M_pad, K_pad)
    R = M_pad // tm

    # TODO(synk): tile K with an f32 VMEM scratch accumulator (pl.when init/finalize)
    # for layers where kh*kw*C is too large to keep a resident (K_pad, tm) cols block.
    out = pl.pallas_call(
        _gemm_bn_relu_kernel,
        out_shape=jax.ShapeDtypeStruct((N, O_pad, M_pad), jnp.float32),
        grid_spec=pltpu.PrefetchScalarGridSpec(
            num_scalar_prefetch=0,
            grid=(N, R),
            in_specs=[
                pl.BlockSpec((1, K_pad, tm), lambda n, r: (n, 0, r)),    # cols tile
                pl.BlockSpec((O_pad, K_pad), lambda n, r: (0, 0)),       # weights (resident)
                pl.BlockSpec((O_pad, 1), lambda n, r: (0, 0)),           # bias (resident)
            ],
            out_specs=pl.BlockSpec((1, O_pad, tm), lambda n, r: (n, 0, r)),
        ),
        compiler_params=pltpu.CompilerParams(
            dimension_semantics=("parallel", "parallel")),
    )(cols, w2d, bias_p)

    # (N, O_pad, M_pad) -> NCHW via cheap channel/pixel slice + reshape (no transpose).
    return out[:, :O, :M].reshape(N, O, OH, OW)


# ----------------------------- reference check ----------------------------- #
def _reference(x, weight, gamma, beta, running_mean, running_var,
               stride=1, padding=0, eps=1e-3):
    scale = gamma / jnp.sqrt(running_var + eps)
    bias = beta - running_mean * scale
    # Quantize folded weights / activations to bf16 exactly like the kernel path,
    # so the comparison isolates kernel correctness rather than bf16 rounding.
    w_fold = (weight * scale[:, None, None, None]).astype(jnp.bfloat16).astype(jnp.float32)
    xq = x.astype(jnp.bfloat16).astype(jnp.float32)
    y = jax.lax.conv_general_dilated(
        xq, w_fold, window_strides=(stride, stride),
        padding=[(padding, padding), (padding, padding)],
        dimension_numbers=("NCHW", "OIHW", "NCHW"),
        precision=jax.lax.Precision.HIGHEST)
    return jnp.maximum(y + bias[None, :, None, None], 0.0)


if __name__ == "__main__":
    key = jax.random.PRNGKey(0)
    kx, kw_, kg, kb, km, kv = jax.random.split(key, 6)

    # BasicConv2d(in_channels=4, out_channels=8, kernel_size=3, padding=1)
    N, C, H, W = 2, 4, 16, 16
    O, kh, kw = 8, 3, 3

    x = jax.random.normal(kx, (N, C, H, W), dtype=jnp.float32)
    weight = 0.1 * jax.random.normal(kw_, (O, C, kh, kw), dtype=jnp.float32)
    gamma = 1.0 + 0.1 * jax.random.normal(kg, (O,), dtype=jnp.float32)
    beta = 0.1 * jax.random.normal(kb, (O,), dtype=jnp.float32)
    running_mean = 0.1 * jax.random.normal(km, (O,), dtype=jnp.float32)
    running_var = jnp.abs(jax.random.normal(kv, (O,), dtype=jnp.float32)) + 0.5

    # Main check: 3x3, stride 1, padding 1.
    out = basic_conv2d(x, weight, gamma, beta, running_mean, running_var,
                       stride=1, padding=1)
    out = jax.block_until_ready(out)
    ref = _reference(x, weight, gamma, beta, running_mean, running_var,
                     stride=1, padding=1)
    assert out.shape == (N, O, H, W), out.shape
    assert jnp.allclose(out, ref, atol=2e-3, rtol=2e-3), \
        float(jnp.max(jnp.abs(out - ref)))

    # Downsampling variant: 3x3, stride 2, padding 0 (as used by Inception reductions).
    out2 = basic_conv2d(x, weight, gamma, beta, running_mean, running_var,
                        stride=2, padding=0)
    out2 = jax.block_until_ready(out2)
    ref2 = _reference(x, weight, gamma, beta, running_mean, running_var,
                      stride=2, padding=0)
    assert out2.shape == ref2.shape, (out2.shape, ref2.shape)
    assert jnp.allclose(out2, ref2, atol=2e-3, rtol=2e-3), \
        float(jnp.max(jnp.abs(out2 - ref2)))

    print("KERNEL_OK")
</pallas_src>

<mosaic_0001>
module attributes {stable_mosaic.version = 11 : i64} {
  func.func @_gemm_bn_relu_kernel(%arg0: i32, %arg1: i32, %arg2: memref<1x48x256xbf16, #tpu.memory_space<vmem>>, %arg3: memref<16x48xbf16, #tpu.memory_space<vmem>>, %arg4: memref<16x1xf32, #tpu.memory_space<vmem>>, %arg5: memref<1x16x256xf32, #tpu.memory_space<vmem>>) attributes {dimension_semantics = [#tpu.dimension_semantics<parallel>, #tpu.dimension_semantics<parallel>], iteration_bounds = array<i64: 2, 1>, scalar_prefetch = 0 : i64, scratch_operands = 0 : i64, tpu.core_type = #tpu.core_type<tc>, window_params = [{transform_indices = @transform_0, window_bounds = array<i64: 1, 48, 256>}, {pipeline_mode = #tpu.pipeline_mode<synchronous>, transform_indices = @transform_1, window_bounds = array<i64: 16, 48>}, {pipeline_mode = #tpu.pipeline_mode<synchronous>, transform_indices = @transform_2, window_bounds = array<i64: 16, 1>}, {transform_indices = @transform_3, window_bounds = array<i64: 1, 16, 256>}]} {
    %c0 = arith.constant 0 : index
    %c0_0 = arith.constant 0 : index
    %0 = vector.load %arg3[%c0, %c0_0] : memref<16x48xbf16, #tpu.memory_space<vmem>>, vector<16x48xbf16>
    %c0_1 = arith.constant 0 : index
    %c0_2 = arith.constant 0 : index
    %c0_3 = arith.constant 0 : index
    %1 = vector.load %arg2[%c0_1, %c0_2, %c0_3] : memref<1x48x256xbf16, #tpu.memory_space<vmem>>, vector<1x48x256xbf16>
    %2 = vector.shape_cast %1 : vector<1x48x256xbf16> to vector<48x256xbf16>
    %cst = arith.constant dense<0.000000e+00> : vector<16x256xf32>
    %3 = tpu.matmul %0, %2, %cst {dimension_numbers = #tpu.dot_dimension_numbers<[1], [0], [0], [1], [0, 0, 1, 1], [], []>} : vector<16x48xbf16>, vector<48x256xbf16>, vector<16x256xf32> -> vector<16x256xf32>
    %c0_4 = arith.constant 0 : index
    %c0_5 = arith.constant 0 : index
    %4 = vector.load %arg4[%c0_4, %c0_5] : memref<16x1xf32, #tpu.memory_space<vmem>>, vector<16x1xf32>
    %5 = vector.broadcast %4 : vector<16x1xf32> to vector<16x256xf32>
    %6 = arith.addf %3, %5 : vector<16x256xf32>
    %cst_6 = arith.constant 0.000000e+00 : f32
    %7 = vector.broadcast %cst_6 : f32 to vector<16x256xf32>
    %8 = arith.maximumf %6, %7 : vector<16x256xf32>
    %c0_7 = arith.constant 0 : index
    %c0_8 = arith.constant 0 : index
    %c0_9 = arith.constant 0 : index
    %9 = vector.load %arg5[%c0_7, %c0_8, %c0_9] : memref<1x16x256xf32, #tpu.memory_space<vmem>>, vector<1x16x256xf32>
    %10 = vector.shape_cast %9 : vector<1x16x256xf32> to vector<16x256xf32>
    %11 = vector.shape_cast %8 : vector<16x256xf32> to vector<1x16x256xf32>
    tpu.vector_store %arg5[%c0_7, %c0_8, %c0_9], %11 {strides = array<i32>} : memref<1x16x256xf32, #tpu.memory_space<vmem>>, vector<1x16x256xf32>,
    return
  }
  func.func @transform_0(%arg0: i32, %arg1: i32) -> (i32, i32, i32) {
    %c0_i32 = arith.constant 0 : i32
    %c0_i32_0 = arith.constant 0 : i32
    return %arg0, %c0_i32, %arg1 : i32, i32, i32
  }
  func.func @transform_1(%arg0: i32, %arg1: i32) -> (i32, i32) {
    %c0_i32 = arith.constant 0 : i32
    %c0_i32_0 = arith.constant 0 : i32
    %c0_i32_1 = arith.constant 0 : i32
    return %c0_i32, %c0_i32_0 : i32, i32
  }
  func.func @transform_2(%arg0: i32, %arg1: i32) -> (i32, i32) {
    %c0_i32 = arith.constant 0 : i32
    %c0_i32_0 = arith.constant 0 : i32
    %c0_i32_1 = arith.constant 0 : i32
    return %c0_i32, %c0_i32_0 : i32, i32
  }
  func.func @transform_3(%arg0: i32, %arg1: i32) -> (i32, i32, i32) {
    %c0_i32 = arith.constant 0 : i32
    %c0_i32_0 = arith.constant 0 : i32
    return %arg0, %c0_i32, %arg1 : i32, i32, i32
  }
}

</mosaic_0001>

<llo_original>
// kernel: basic_conv2d.1
$region0: #{basic_conv2d.1}
  #allocation0 [shape = 'u32[]', space=smem, size = 0x4, offset = 0x4, fixed_abs, tag = 'smem constant byte address 0x4 - core index']
  #allocation1 [shape = 'u32[144,128]{1,0:T(1,128)}', space=vmem, size = 0x12000, scoped, tag = 'internal scratch']
  %s0 = inlined_call_operand.vmem [shape: bf16[2,48,256], index: 0, kind: input, shape index: {}]
  %s1 = inlined_call_operand.vmem [shape: bf16[16,48], index: 1, kind: input, shape index: {}]
  %s2 = inlined_call_operand.vmem [shape: f32[16,1], index: 2, kind: input, shape index: {}]
  %s3 = inlined_call_operand.vmem [shape: f32[2,16,256], index: 3, kind: output, shape index: {}]
  %s4 = sld [smem:[#allocation0]]
  $region45: #{basic_conv2d.1} parent=0
    _
  %s6 = ssub.s32 1, %s4
  %s7 = scalar_select 0, %s6, %s4
  loop: start=0, step=1, limit=4
  $region2: #{basic_conv2d.1} parent=0 // loop_pre_header
    _
  $region3: #{basic_conv2d.1} parent=0 // loop_header
    %s9 = sphi 0, %s13
    %p10 = scmp.ge.s32.totalorder %s9, 4
    %s16 = sphi 0, %s28
    %s17 = sphi 0, %s24
    %s18 = sphi 0, %s16
    %s19 = sphi 0, %s17
    %s20 = sphi 0, %s18
    %s21 = sphi 0, %s19
    %s33 = sphi 0, %s35
    %s36 = sphi 0, %s33
    %s37 = sphi 0, %s36
    %s53 = sphi 0, %s37
    %s57 = sphi 0, %s57
    %s59 = sphi 0, %s57
    %s60 = sphi 0, %s59
    %s74 = sphi 0, %s60
    %s78 = sphi 0, %s78
    %s80 = sphi 0, %s78
    %s81 = sphi 0, %s80
    %s95 = sphi 0, %s81
    %s103 = sphi 0, %s105
    %s106 = sphi 0, %s103
    %s107 = sphi 0, %s106
    %s123 = sphi 0, %s107
  $region4: #{basic_conv2d.1} parent=0 // loop_header_branch
    %12 = sbr.rel (%p10) target = $region8
  $region5: #{basic_conv2d.1} parent=0 // loop_body
    %s14 = ssub.s32 %s9, 1
    %s15 = ssub.s32 %s9, 2
    %s22 = sadd.s32 1, %s17
    %p23 = scmp.ge.s32.totalorder %s22, 1
    %s24 = scalar_select %p23, 0, %s22
    %s25 = sadd.s32 1, %s16
    %s26 = scalar_select %p23, %s25, %s16
    %p27 = scmp.ge.s32.totalorder %s26, 2
    %s28 = scalar_select %p27, 0, %s26
    %s29 = ssub.s32 %s16, %s28
    %s30 = ssub.s32 %s17, %s24
    %s31 = sor.u32 %s29, %s30
    %p32 = scmp.eq.s32.totalorder %s31, 0
    %s34 = sadd.s32 %s33, 1
    %s35 = scalar_select %p32, %s33, %s34
    %p38 = pneg %p32
    %p39 = scmp.eq.s32.totalorder %s9, 1
    %p40 = por %p38, %p39
    %p41 = scmp.ne.s32.totalorder %s33, %s36
    %p42 = scmp.eq.s32.totalorder %s9, 0
    %p43 = por %p41, %p42
    %p44 = scmp.ne.s32.totalorder %s33, %s36
    %p45 = scmp.eq.s32.totalorder %s14, 1
    %p46 = por %p44, %p45
    %p47 = scmp.ne.s32.totalorder %s36, %s37
    %p48 = scmp.eq.s32.totalorder %s14, 0
    %p49 = por %p47, %p48
    %p50 = scmp.ne.s32.totalorder %s36, %s37
    %p51 = scmp.eq.s32.totalorder %s15, 1
    %p52 = por %p50, %p51
    %p54 = scmp.ne.s32.totalorder %s37, %s53
    %p55 = scmp.eq.s32.totalorder %s15, 0
    %p56 = por %p54, %p55
    %s58 = sadd.s32 %s57, 1
    %p61 = scmp.eq.s32.totalorder %s9, 1
    %p62 = scmp.ne.s32.totalorder %s57, %s59
    %p63 = scmp.eq.s32.totalorder %s9, 0
    %p64 = por %p62, %p63
    %p65 = scmp.ne.s32.totalorder %s57, %s59
    %p66 = scmp.eq.s32.totalorder %s14, 1
    %p67 = por %p65, %p66
    %p68 = scmp.ne.s32.totalorder %s59, %s60
    %p69 = scmp.eq.s32.totalorder %s14, 0
    %p70 = por %p68, %p69
    %p71 = scmp.ne.s32.totalorder %s59, %s60
    %p72 = scmp.eq.s32.totalorder %s15, 1
    %p73 = por %p71, %p72
    %p75 = scmp.ne.s32.totalorder %s60, %s74
    %p76 = scmp.eq.s32.totalorder %s15, 0
    %p77 = por %p75, %p76
    %s79 = sadd.s32 %s78, 1
    %p82 = scmp.eq.s32.totalorder %s9, 1
    %p83 = scmp.ne.s32.totalorder %s78, %s80
    %p84 = scmp.eq.s32.totalorder %s9, 0
    %p85 = por %p83, %p84
    %p86 = scmp.ne.s32.totalorder %s78, %s80
    %p87 = scmp.eq.s32.totalorder %s14, 1
    %p88 = por %p86, %p87
    %p89 = scmp.ne.s32.totalorder %s80, %s81
    %p90 = scmp.eq.s32.totalorder %s14, 0
    %p91 = por %p89, %p90
    %p92 = scmp.ne.s32.totalorder %s80, %s81
    %p93 = scmp.eq.s32.totalorder %s15, 1
    %p94 = por %p92, %p93
    %p96 = scmp.ne.s32.totalorder %s81, %s95
    %p97 = scmp.eq.s32.totalorder %s15, 0
    %p98 = por %p96, %p97
    %s99 = ssub.s32 %s16, %s28
    %s100 = ssub.s32 %s17, %s24
    %s101 = sor.u32 %s99, %s100
    %p102 = scmp.eq.s32.totalorder %s101, 0
    %s104 = sadd.s32 %s103, 1
    %s105 = scalar_select %p102, %s103, %s104
    %p108 = pneg %p102
    %p109 = scmp.eq.s32.totalorder %s9, 1
    %p110 = por %p108, %p109
    %p111 = scmp.ne.s32.totalorder %s103, %s106
    %p112 = scmp.eq.s32.totalorder %s9, 0
    %p113 = por %p111, %p112
    %p114 = scmp.ne.s32.totalorder %s103, %s106
    %p115 = scmp.eq.s32.totalorder %s14, 1
    %p116 = por %p114, %p115
    %p117 = scmp.ne.s32.totalorder %s106, %s107
    %p118 = scmp.eq.s32.totalorder %s14, 0
    %p119 = por %p117, %p118
    %p120 = scmp.ne.s32.totalorder %s106, %s107
    %p121 = scmp.eq.s32.totalorder %s15, 1
    %p122 = por %p120, %p121
    %p124 = scmp.ne.s32.totalorder %s107, %s123
    %p125 = scmp.eq.s32.totalorder %s15, 0
    %p126 = por %p124, %p125
    %p127 = scmp.le.s32.totalorder 1, %s9
    %p128 = scmp.lt.s32.totalorder %s9, 3
    %p129 = pnand %p127, %p128
    %p130 = pneg %p129
    // Predicated region
    $region9: #{basic_conv2d.1} parent=5 // pred_check
      _
    $region10: #{basic_conv2d.1} parent=5 // pred_check_branch
      %132 = sbr.rel (%p129) target = $region12
    $region11: #{basic_conv2d.1} parent=5 // pred_region
      %s133 = ssub.s32 %s9, 1
      // Predicated region
      $region13: #{basic_conv2d.1} parent=11 // pred_check
        %p134 = pneg %p70
      $region14: #{basic_conv2d.1} parent=11 // pred_check_branch
        %136 = sbr.rel (%p134) target = $region16
      $region15: #{basic_conv2d.1} parent=11 // pred_region
        _
      $region16: #{basic_conv2d.1} parent=11 // pred_fallthru
        _
      // Predicated region
      $region17: #{basic_conv2d.1} parent=11 // pred_check
        %p137 = pneg %p91
      $region18: #{basic_conv2d.1} parent=11 // pred_check_branch
        %139 = sbr.rel (%p137) target = $region20
      $region19: #{basic_conv2d.1} parent=11 // pred_region
        _
      $region20: #{basic_conv2d.1} parent=11 // pred_fallthru
        _
    $region12: #{basic_conv2d.1} parent=5 // pred_fallthru
      _
    %p140 = scmp.lt.s32.totalorder %s9, 2
    // Predicated region
    $region21: #{basic_conv2d.1} parent=5 // pred_check
      %p141 = pneg %p140
    $region22: #{basic_conv2d.1} parent=5 // pred_check_branch
      %143 = sbr.rel (%p141) target = $region24
    $region23: #{basic_conv2d.1} parent=5 // pred_region
      // Predicated region
      $region25: #{basic_conv2d.1} parent=23 // pred_check
        %p144 = pneg %p43
      $region26: #{basic_conv2d.1} parent=23 // pred_check_branch
        %146 = sbr.rel (%p144) target = $region28
      $region27: #{basic_conv2d.1} parent=23 // pred_region
        %s147 = smul.u32 2, %s17
        %p148 = scmp.lt.s32.totalorder %s16, 1
        %s149 = scalar_select %p148, %s16, 1
        %p150 = scmp.lt.s32.totalorder %s147, 1
        %s151 = scalar_select %p150, %s147, 1
        %s152 = smul.addr %s149, 12
        %s153 = sadd.s32 %s151, %s152
        %s154 = smul.addr %s153, 4
        %s155 = scalar_lea.vmem %s0, %s154
        %s156 = smul.u32 2, %s17
      $region28: #{basic_conv2d.1} parent=23 // pred_fallthru
        _
    $region24: #{basic_conv2d.1} parent=5 // pred_fallthru
      _
    %p157 = scmp.le.s32.totalorder 1, %s9
    %p158 = scmp.lt.s32.totalorder %s9, 3
    %p159 = pnand %p157, %p158
    %p160 = pneg %p159
    // Predicated region
    $region29: #{basic_conv2d.1} parent=5 // pred_check
      _
    $region30: #{basic_conv2d.1} parent=5 // pred_check_branch
      %162 = sbr.rel (%p159) target = $region32
    $region31: #{basic_conv2d.1} parent=5 // pred_region
      %s163 = ssub.s32 %s9, 1
      %s164 = smul.u32 2, %s19
      %p165 = scmp.lt.s32.totalorder %s18, 1
      %s166 = scalar_select %p165, %s18, 1
      %p167 = scmp.lt.s32.totalorder %s164, 1
      %s168 = scalar_select %p167, %s164, 1
      %s169 = smul.addr %s166, 12
      %s170 = sadd.s32 %s168, %s169
      %s171 = smul.addr %s170, 4
      %s172 = scalar_lea.vmem %s0, %s171
      %p173 = pneg %p49
      %p174 = pneg %p46
      %p175 = pneg %p70
      %p176 = pneg %p67
      %p177 = pneg %p91
      %p178 = pneg %p88
      %p179 = pneg %p119
      %p180 = pneg %p116
      %s181 = smul.u32 2, %s19
      %p182 = scmp.lt.s32.totalorder %s18, 1
      %s183 = scalar_select %p182, %s18, 1
      %p184 = scmp.lt.s32.totalorder %s181, 1
      %s185 = scalar_select %p184, %s181, 1
      %s186 = smul.addr %s183, 4
      %s187 = sadd.s32 %s185, %s186
      %s188 = smul.addr %s187, 8
      %s189 = scalar_lea.vmem %s3, %s188
      %s190 = smul.u32 2, %s19
      %p191 = scmp.lt.s32.totalorder %s18, 1
      %s192 = scalar_select %p191, %s18, 1
      %p193 = scmp.lt.s32.totalorder %s190, 1
      %s194 = scalar_select %p193, %s190, 1
      %s195 = smul.addr %s192, 12
      %s196 = sadd.s32 %s194, %s195
      %s197 = smul.addr %s196, 4
      %s198 = scalar_lea.vmem %s0, %s197
      %s199 = smul.u32 2, %s19
      %s200 = smul.u32 2, %s19
      %p201 = scmp.lt.s32.totalorder %s18, 1
      %s202 = scalar_select %p201, %s18, 1
      %p203 = scmp.lt.s32.totalorder %s200, 1
      %s204 = scalar_select %p203, %s200, 1
      %s205 = smul.addr %s202, 4
      %s206 = sadd.s32 %s204, %s205
      %s207 = smul.addr %s206, 8
      %s208 = scalar_lea.vmem %s3, %s207
      %s209 = smul.u32 2, %s19
      %v211 = vld [vmem:[%s1] sm:$0xf]
      %v212 = vld [vmem:[%s1 + $0x4] sm:$0xf]
      %v213 = vld [vmem:[%s198] sm:$0xff]
      %v214 = vld [vmem:[%s198 + $0x8] sm:$0xff]
      %v215 = vld [vmem:[%s198 + $0x10] sm:$0xff]
      %v216 = vld [vmem:[%s198 + $0x18] sm:$0xff]
      %v217 = vld [vmem:[%s198 + $0x20] sm:$0xff]
      %v218 = vld [vmem:[%s198 + $0x28] sm:$0xff]
      %v219 = vld [vmem:[%s2] sm:$0xff]
      %v220 = vld [vmem:[%s2 + $0x8] sm:$0xff]
      %222 = vset.pattern.permute.xlu0 0
      %223 = vperm.xlu0 %222, %v219
      %v224 = vpop.permute.xlu0 %223
      %227 = vset.pattern.permute.xlu0 0
      %228 = vperm.xlu0 %227, %v220
      %v229 = vpop.permute.xlu0 %228
      %v233 = vunpack.c.l.b16 %v211
      %v234 = vunpack.c.l.b16 %v212
      %v235 = vpack.c.b16 %v234, %v233
      %v242 = vunpack.c.l.b16 %v213
      %v243 = vunpack.c.h.b16 %v213
      %v244 = vunpack.c.l.b16 %v214
      %v245 = vunpack.c.h.b16 %v214
      %v246 = vunpack.c.l.b16 %v215
      %v247 = vunpack.c.h.b16 %v215
      %v248 = vunpack.c.l.b16 %v216
      %v249 = vunpack.c.h.b16 %v216
      %v250 = vunpack.c.l.b16 %v217
      %v251 = vunpack.c.h.b16 %v217
      %v252 = vunpack.c.l.b16 %v218
      %v253 = vunpack.c.h.b16 %v218
      %v254 = vpack.c.b16 %v244, %v242
      %v255 = vpack.c.b16 %v245, %v243
      %v256 = vpack.c.b16 %v248, %v246
      %v257 = vpack.c.b16 %v249, %v247
      %v258 = vpack.c.b16 %v252, %v250
      %v259 = vpack.c.b16 %v253, %v251
      %vm266 = vcmask 392192
      %v268 = vsel %vm266, %v235, 0
      %270 = vmatprep.subr.bf16.mxu0 %v255
      %271 = vmatpush1.bf16.msra.mxu0 %v254
      %272 = vmatprep.subr.bf16.mxu0 %v257
      %273 = vmatpush1.bf16.msra.mxu0 %v256
      %274 = vmatprep.subr.bf16.mxu0 %v259
      %275 = vmatpush1.bf16.msra.mxu0 %v258
      %276 = vmatprep.subr.bf16.mxu0 0
      %277 = vmatpush1.bf16.msra.mxu0 0
      %278 = vmatprep.subr.bf16.mxu0 0
      %279 = vmatpush1.bf16.msra.mxu0 0
      %280 = vmatprep.subr.bf16.mxu0 0
      %281 = vmatpush1.bf16.msra.mxu0 0
      %282 = vmatprep.subr.bf16.mxu0 0
      %283 = vmatpush1.bf16.msra.mxu0 0
      %284 = vmatprep.subr.bf16.mxu0 0
      %285 = vmatpush1.bf16.msra.mxu0 0
      %286 = vmatprep.subr.bf16.mxu0 0
      %287 = vmatpush1.bf16.msra.mxu0 0
      %288 = vmatprep.subr.bf16.mxu0 0
      %289 = vmatpush1.bf16.msra.mxu0 0
      %290 = vmatprep.subr.bf16.mxu0 0
      %291 = vmatpush1.bf16.msra.mxu0 0
      %292 = vmatprep.subr.bf16.mxu0 0
      %293 = vmatpush1.bf16.msra.mxu0 0
      %294 = vmatprep.subr.bf16.mxu0 0
      %295 = vmatpush1.bf16.msra.mxu0 0
      %296 = vmatprep.subr.bf16.mxu0 0
      %297 = vmatpush1.bf16.msra.mxu0 0
      %298 = vmatprep.subr.bf16.mxu0 0
      %299 = vmatpush1.bf16.msra.mxu0 0
      %300 = vmatprep.subr.bf16.mxu0 0
      %301 = vmatpush1.bf16.msra.mxu0 0
      %302 = vmatprep.mubr.bf16.mxu0 0
      %303 = vmatmul.mubr.bf16.gmra.mrb[0].mxu0 %v268
      %v304 = vpop.f32.mrb[0].mxu0
      %v305 = vadd.f32 %v224, %v304
      %v306 = vpop.f32.mrb[0].mxu0
      %v307 = vadd.f32 %v224, %v306
      %v308 = vpop.f32.mrb[0].mxu0
      %v309 = vadd.f32 %v229, %v308
      %v310 = vpop.f32.mrb[0].mxu0
      %v311 = vadd.f32 %v229, %v310
      %312 = vdwg.mxu0
      %v313 = vmax.f32 %v305, 0.0
      %v314 = vmax.f32 %v307, 0.0
      %v315 = vmax.f32 %v309, 0.0
      %v316 = vmax.f32 %v311, 0.0
      %317 = vst [vmem:[%s208] sm:$0xff] %v313
      %318 = vst [vmem:[%s208 + $0x8] sm:$0xff] %v314
      %319 = vst [vmem:[%s208 + $0x10] sm:$0xff] %v315
      %320 = vst [vmem:[%s208 + $0x18] sm:$0xff] %v316
      %s321 = smul.u32 2, %s19
      %p322 = scmp.lt.s32.totalorder %s18, 1
      %s323 = scalar_select %p322, %s18, 1
      %p324 = scmp.lt.s32.totalorder %s321, 1
      %s325 = scalar_select %p324, %s321, 1
      %s326 = smul.addr %s323, 4
      %s327 = sadd.s32 %s325, %s326
      %s328 = smul.addr %s327, 8
      %s329 = scalar_lea.vmem %s3, %s328
      // Predicated region
      $region33: #{basic_conv2d.1} parent=31 // pred_check
        %p330 = pneg %p116
      $region34: #{basic_conv2d.1} parent=31 // pred_check_branch
        %332 = sbr.rel (%p330) target = $region36
      $region35: #{basic_conv2d.1} parent=31 // pred_region
        %s333 = smul.u32 2, %s19
      $region36: #{basic_conv2d.1} parent=31 // pred_fallthru
        _
    $region32: #{basic_conv2d.1} parent=5 // pred_fallthru
      _
    %p334 = scmp.le.s32.totalorder 2, %s9
    // Predicated region
    $region37: #{basic_conv2d.1} parent=5 // pred_check
      %p335 = pneg %p334
    $region38: #{basic_conv2d.1} parent=5 // pred_check_branch
      %337 = sbr.rel (%p335) target = $region40
    $region39: #{basic_conv2d.1} parent=5 // pred_region
      %s338 = ssub.s32 %s9, 2
      // Predicated region
      $region41: #{basic_conv2d.1} parent=39 // pred_check
        %p339 = pneg %p122
      $region42: #{basic_conv2d.1} parent=39 // pred_check_branch
        %341 = sbr.rel (%p339) target = $region44
      $region43: #{basic_conv2d.1} parent=39 // pred_region
        %s342 = smul.u32 2, %s21
        %p343 = scmp.lt.s32.totalorder %s20, 1
        %s344 = scalar_select %p343, %s20, 1
        %p345 = scmp.lt.s32.totalorder %s342, 1
        %s346 = scalar_select %p345, %s342, 1
        %s347 = smul.addr %s344, 4
        %s348 = sadd.s32 %s346, %s347
        %s349 = smul.addr %s348, 8
        %s350 = scalar_lea.vmem %s3, %s349
      $region44: #{basic_conv2d.1} parent=39 // pred_fallthru
        _
    $region40: #{basic_conv2d.1} parent=5 // pred_fallthru
      _
  $region6: #{basic_conv2d.1} parent=0 // loop_footer
    %s13 = sadd.s32 1, %s9
  $region7: #{basic_conv2d.1} parent=0 // loop_footer_branch
    %8 = sbr.rel target = $region3
  $region8: #{basic_conv2d.1} parent=0 // loop_exit
    _

</llo_original>
